<compile_context>
chip_gen: v6e
topology: v6e:2x2x1
jax: 0.10.0
libtpu: 0.0.40
codegen_flags: <defaults>
</compile_context>

<pallas_src>
import functools

import jax
import jax.numpy as jnp
from jax import lax
from jax.experimental import pallas as pl
from jax.experimental.pallas import tpu as pltpu

_NEG = -3.0e38          # finite stand-in for "masked" during selection (f32-safe)
_NEG_THRESH = -1.0e38   # anything at/below this is reported back as -inf


def _round_up(x: int, m: int) -> int:
    return ((x + m - 1) // m) * m


def _pick_tm(n: int, pref: int = 128) -> int:
    """Row-block size for the [N, N] score stage (v7x-safe default of 128 rows)."""
    if n <= pref:
        return n
    for t in (pref, 64, 32, 16, 8):
        if n % t == 0:
            return t
    return n


# ----------------------------------------------------------------------------
# Shared masked top-k (runs inside the kernels)
# ----------------------------------------------------------------------------
def _mask_topk(bs_blk, lrow, k, kp):
    """Masked row-wise top-k of a [TM, N] bilinear-score block.

    lrow: [TM, 1] int32 logical row index; column j is a valid antecedent iff
    j < lrow (the torch `log(i - j > 0)` pair mask).  Returns ([TM, KP] f32,
    [TM, KP] i32); columns >= k are padding (lane-dense output slab).
    """
    tm, n = bs_blk.shape
    col = lax.broadcasted_iota(jnp.int32, (tm, n), 1)
    # Masked entries get a large *finite* negative so that "taken" entries (-inf)
    # always sort below anything still selectable -> k distinct indices per row.
    work = jnp.where(col < lrow, jnp.maximum(bs_blk, _NEG), _NEG)
    kcol = lax.broadcasted_iota(jnp.int32, (tm, kp), 1)
    vals0 = jnp.full((tm, kp), -jnp.inf, dtype=jnp.float32)
    idxs0 = jnp.zeros((tm, kp), dtype=jnp.int32)

    def step(j, carry):
        work, vals, idxs = carry
        mx = jnp.max(work, axis=1, keepdims=True)                     # row max == value
        hit = work == mx
        idx = jnp.min(jnp.where(hit, col, n), axis=1, keepdims=True)  # smallest-col tie break
        work = jnp.where(col == idx, -jnp.inf, work)                  # mark taken
        vals = jnp.where(kcol == j, mx, vals)
        idxs = jnp.where(kcol == j, idx, idxs)
        return work, vals, idxs

    carry = (work, vals0, idxs0)
    if k <= 8:                      # short static loop: unroll for scheduler visibility
        for j in range(k):
            carry = step(j, carry)
    else:                           # large k: bound live ranges / vreg pressure
        carry = lax.fori_loop(0, k, step, carry)
    _, vals, idxs = carry
    vals = jnp.where(vals <= _NEG_THRESH, -jnp.inf, vals)             # report -inf like torch
    return vals, idxs


# ----------------------------------------------------------------------------
# Kernel 1: first=True path (row-blocked, parallel grid)
# ----------------------------------------------------------------------------
def _first_kernel(m_blk_ref, m_all_ref, w_ref, b_ref,
                  ts_ref, ti_ref, ws_ref, bs_ref, *, k, kp, tm):
    # window_scores = dropout(Linear(mentions)); dropout == identity at inference.
    ws = lax.dot_general(m_blk_ref[...], w_ref[...], (((1,), (1,)), ((), ())),
                         preferred_element_type=jnp.float32) + b_ref[...]
    # bilinear_scores = window_scores @ mentions.T (bf16 on the MXU, f32 accum).
    bs = lax.dot_general(ws.astype(jnp.bfloat16), m_all_ref[...],
                         (((1,), (1,)), ((), ())),
                         preferred_element_type=jnp.float32)
    base = pl.program_id(0) * tm
    lrow = base + lax.broadcasted_iota(jnp.int32, (tm, 1), 0)
    ts, ti = _mask_topk(bs, lrow, k, kp)
    ts_ref[...] = ts
    ti_ref[...] = ti
    ws_ref[...] = ws
    bs_ref[...] = bs


@functools.partial(jax.jit, static_argnames=("k",))
def _first_call(m_bf16, w_bf16, b_pad, *, k):
    n, fp = m_bf16.shape
    kp = _round_up(max(k, 1), 128)
    tm = _pick_tm(n)
    grid_spec = pltpu.PrefetchScalarGridSpec(
        num_scalar_prefetch=0,
        grid=(n // tm,),
        in_specs=[
            pl.BlockSpec((tm, fp), lambda i: (i, 0)),   # mentions row block
            pl.BlockSpec((n, fp), lambda i: (0, 0)),    # full mentions (RHS of bilinear)
            pl.BlockSpec((fp, fp), lambda i: (0, 0)),   # bilinear weight (bf16)
            pl.BlockSpec((1, fp), lambda i: (0, 0)),    # bilinear bias (f32)
        ],
        out_specs=(
            pl.BlockSpec((tm, kp), lambda i: (i, 0)),
            pl.BlockSpec((tm, kp), lambda i: (i, 0)),
            pl.BlockSpec((tm, fp), lambda i: (i, 0)),
            pl.BlockSpec((tm, n), lambda i: (i, 0)),
        ),
    )
    ts, ti, ws, bs = pl.pallas_call(
        functools.partial(_first_kernel, k=k, kp=kp, tm=tm),
        out_shape=(
            jax.ShapeDtypeStruct((n, kp), jnp.float32),   # top scores (lane padded)
            jax.ShapeDtypeStruct((n, kp), jnp.int32),     # top indices (lane padded)
            jax.ShapeDtypeStruct((n, fp), jnp.float32),   # window_scores state
            jax.ShapeDtypeStruct((n, n), jnp.float32),    # bilinear_scores state
        ),
        grid_spec=grid_spec,
        compiler_params=pltpu.CompilerParams(dimension_semantics=("parallel",)),
    )(m_bf16, m_bf16, w_bf16, b_pad)
    return ts[:, :k], ti[:, :k], ws, bs


# ----------------------------------------------------------------------------
# Kernel 2: incremental window_scores row update (in place) + per-row dots
# ----------------------------------------------------------------------------
def _ws_update_kernel(head_ref, last_ref, w_ref, b_ref, ws_in_ref,
                      ws_out_ref, d_ref, ws_vmem, nm_vmem, sem):
    n, _ = ws_vmem.shape
    h = head_ref[0]                                   # physical row of (old) logical row 0
    # Pull the whole window_scores state into VMEM (this read is needed for `d`).
    cp_in = pltpu.make_async_copy(ws_in_ref, ws_vmem, sem)
    cp_in.start()
    # new_mention_scores = dropout(Linear(mentions[-1])) ; identity dropout.
    nm = lax.dot_general(last_ref[...], w_ref[...], (((1,), (1,)), ((), ())),
                         preferred_element_type=jnp.float32) + b_ref[...]      # [1, Fp] f32
    nm_vmem[...] = nm
    cp_in.wait()
    # New state: physical row h now holds the newest mention's scores.
    rows = lax.broadcasted_iota(jnp.int32, (n, 1), 0)
    ws_new = jnp.where(rows == h, nm, ws_vmem[...])                            # [N, Fp]
    # d[p] = ws_new_phys[p] . nm  (bf16 on the MXU, f32 accumulation)
    d_ref[...] = lax.dot_general(nm.astype(jnp.bfloat16),
                                 ws_new.astype(jnp.bfloat16),
                                 (((1,), (1,)), ((), ())),
                                 preferred_element_type=jnp.float32)           # [1, N]
    # O(Fp) in-place state write: only the evicted row changes.
    cp_out = pltpu.make_async_copy(nm_vmem, ws_out_ref.at[pl.ds(h, 1), :], sem)
    cp_out.start()
    cp_out.wait()


# ----------------------------------------------------------------------------
# Kernel 3: write one row of a big state array in place (O(N) instead of O(N^2))
# ----------------------------------------------------------------------------
def _row_write_kernel(idx_ref, row_ref, state_in_ref, state_out_ref, sem):
    del state_in_ref  # present only so the state buffer is aliased in place
    h = idx_ref[0]
    cp = pltpu.make_async_copy(row_ref, state_out_ref.at[pl.ds(h, 1), :], sem)
    cp.start()
    cp.wait()


# ----------------------------------------------------------------------------
# Kernel 4: masked top-k over the circular bilinear-score state (parallel grid)
# ----------------------------------------------------------------------------
def _prune_kernel(hnew_ref, bs_ref, ts_ref, ti_ref, *, k, kp, tm):
    n = bs_ref.shape[1]
    h_new = hnew_ref[0]
    base = pl.program_id(0) * tm
    prow = base + lax.broadcasted_iota(jnp.int32, (tm, 1), 0)   # physical row index
    diff = prow - h_new
    lrow = jnp.where(diff >= 0, diff, diff + n)                 # logical row index
    ts, ti = _mask_topk(bs_ref[...], lrow, k, kp)
    ts_ref[...] = ts
    ti_ref[...] = ti


@functools.partial(jax.jit, static_argnames=("k",), donate_argnames=("ws", "bs"))
def _incr_step(head, last_bf16, w_bf16, b_pad, ws, bs, *, k):
    n, fp = ws.shape
    kp = _round_up(max(k, 1), 128)
    tm = _pick_tm(n)

    # ---- in-place window_scores row update + d[p] = ws_phys[p] . new_mention ----
    ws_new, d = pl.pallas_call(
        _ws_update_kernel,
        out_shape=(jax.ShapeDtypeStruct((n, fp), jnp.float32),
                   jax.ShapeDtypeStruct((1, n), jnp.float32)),
        in_specs=[
            pl.BlockSpec(memory_space=pltpu.MemorySpace.SMEM),   # head (old)
            pl.BlockSpec(memory_space=pltpu.MemorySpace.VMEM),   # last mention (bf16)
            pl.BlockSpec(memory_space=pltpu.MemorySpace.VMEM),   # W (bf16)
            pl.BlockSpec(memory_space=pltpu.MemorySpace.VMEM),   # b (f32)
            pl.BlockSpec(memory_space=pl.ANY),                   # window_scores state (HBM)
        ],
        out_specs=(pl.BlockSpec(memory_space=pl.ANY),            # aliased state, in place
                   pl.BlockSpec(memory_space=pltpu.MemorySpace.VMEM)),
        scratch_shapes=[pltpu.VMEM((n, fp), jnp.float32),
                        pltpu.VMEM((1, fp), jnp.float32),
                        pltpu.SemaphoreType.DMA],
        input_output_aliases={4: 0},
    )(head, last_bf16, w_bf16, b_pad, ws)

    # ---- reorder d into the new bilinear row (cheap O(N) op outside the kernel) ----
    # TODO(synk): the lane rotation has a dynamic shift; done with jnp.roll outside the
    # kernel instead of an in-kernel dynamic pltpu.roll to keep kernel shapes static.
    h_new = (head[0] + 1) % n
    new_row = jnp.roll(d, -(h_new + 1), axis=1)
    new_row = new_row.at[0, n - 1].set(-jnp.inf)

    # ---- O(N) in-place bilinear_scores row write ----
    bs_new = pl.pallas_call(
        _row_write_kernel,
        out_shape=jax.ShapeDtypeStruct((n, n), jnp.float32),
        in_specs=[
            pl.BlockSpec(memory_space=pltpu.MemorySpace.SMEM),   # row index (= old head)
            pl.BlockSpec(memory_space=pltpu.MemorySpace.VMEM),   # new row
            pl.BlockSpec(memory_space=pl.ANY),                   # bilinear_scores state
        ],
        out_specs=pl.BlockSpec(memory_space=pl.ANY),
        scratch_shapes=[pltpu.SemaphoreType.DMA],
        input_output_aliases={2: 0},
    )(head, new_row, bs)

    # ---- masked top-k over row blocks (parallel grid -> megacore on v7x) ----
    hn_arr = jnp.reshape(h_new, (1,)).astype(jnp.int32)
    grid_spec = pltpu.PrefetchScalarGridSpec(
        num_scalar_prefetch=1,
        grid=(n // tm,),
        in_specs=[pl.BlockSpec((tm, n), lambda i, hn: (i, 0))],
        out_specs=(pl.BlockSpec((tm, kp), lambda i, hn: (i, 0)),
                   pl.BlockSpec((tm, kp), lambda i, hn: (i, 0))),
    )
    ts_p, ti_p = pl.pallas_call(
        functools.partial(_prune_kernel, k=k, kp=kp, tm=tm),
        out_shape=(jax.ShapeDtypeStruct((n, kp), jnp.float32),
                   jax.ShapeDtypeStruct((n, kp), jnp.int32)),
        grid_spec=grid_spec,
        compiler_params=pltpu.CompilerParams(dimension_semantics=("parallel",)),
    )(hn_arr, bs_new)

    # physical (circular) row order -> logical oldest-first order; drop lane padding.
    ts = jnp.roll(ts_p, -h_new, axis=0)[:, :k]
    ti = jnp.roll(ti_p, -h_new, axis=0)[:, :k]
    return ts, ti, ws_new, bs_new


# ----------------------------------------------------------------------------
# Module wrapper
# ----------------------------------------------------------------------------
class IncrementalRoughScorerPallas:
    """Functional port of coref.rough_scorer.IncrementalRoughScorer (inference)."""

    def __init__(self, features: int, rough_k: int, key):
        kw, kb = jax.random.split(key)
        bound = 1.0 / (features ** 0.5)          # torch nn.Linear default init bounds
        self.features = features
        self.k = rough_k
        self.weight = jax.random.uniform(kw, (features, features), jnp.float32, -bound, bound)
        self.bias = jax.random.uniform(kb, (features,), jnp.float32, -bound, bound)
        # Zero-pad the bilinear to a lane-aligned feature dim once; keep a bf16 copy
        # of the weight for the MXU (accumulation stays f32 inside the kernels).
        self.fp = _round_up(features, 128)
        w_pad = jnp.zeros((self.fp, self.fp), jnp.float32).at[:features, :features].set(self.weight)
        b_pad = jnp.zeros((1, self.fp), jnp.float32).at[0, :features].set(self.bias)
        self.w_bf16 = w_pad.astype(jnp.bfloat16)
        self.b_pad = b_pad
        # TODO(synk): dropout is identity at inference; training-time dropout not implemented.
        self.window_scores = None      # [N, Fp] f32, circular rows
        self.bilinear_scores = None    # [N, N]  f32, circular rows / logical columns
        self.head = 0                  # physical row currently holding logical row 0

    def _pad_feats(self, x):
        out = jnp.zeros((x.shape[0], self.fp), jnp.float32)
        return out.at[:, : self.features].set(x)

    def __call__(self, mentions, first: bool, window_size: int):
        if first:
            n = mentions.shape[0]
            k = min(self.k, n)
            m_bf16 = self._pad_feats(mentions).astype(jnp.bfloat16)
            ts, ti, ws, bs = _first_call(m_bf16, self.w_bf16, self.b_pad, k=k)
            self.window_scores, self.bilinear_scores, self.head = ws, bs, 0
            return ts, ti
        n = self.window_scores.shape[0]
        k = min(self.k, n)
        last_bf16 = self._pad_feats(mentions[-1:, :]).astype(jnp.bfloat16)
        head = jnp.array([self.head], dtype=jnp.int32)
        ts, ti, ws, bs = _incr_step(head, last_bf16, self.w_bf16, self.b_pad,
                                    self.window_scores, self.bilinear_scores, k=k)
        self.window_scores, self.bilinear_scores = ws, bs
        self.head = (self.head + 1) % n
        return ts, ti


# ----------------------------------------------------------------------------
# Pure-JAX reference (mirrors the kernels' bf16-on-MXU casts) and checks
# ----------------------------------------------------------------------------
def _bf16_dot(a, bt):
    """a @ bt.T with bf16 inputs and f32 accumulation (mirrors the MXU path)."""
    return jnp.dot(a.astype(jnp.bfloat16), bt.astype(jnp.bfloat16).T,
                   preferred_element_type=jnp.float32)


def _pair_mask_ref(n):
    i = jnp.arange(n)
    return jnp.where(i[:, None] > i[None, :], 0.0, -jnp.inf).astype(jnp.float32)


def _ref_first(mentions, weight, bias):
    ws = _bf16_dot(mentions, weight) + bias
    bs = _bf16_dot(ws, mentions)
    return ws, bs, _pair_mask_ref(mentions.shape[0]) + bs


def _ref_incr(new_mention, ws_prev, bs_prev, weight, bias):
    nm = _bf16_dot(new_mention, weight) + bias
    ws_new = jnp.concatenate([ws_prev[1:], nm], axis=0)
    nb = _bf16_dot(nm, ws_new[1:])
    nb = jnp.concatenate([nb, jnp.full((1, 1), -jnp.inf, jnp.float32)], axis=1)
    bs_new = jnp.concatenate([bs_prev[1:], nb], axis=0)
    return ws_new, bs_new, _pair_mask_ref(ws_new.shape[0]) + bs_new


def _check(name, ts, ti, ref_rough, k):
    ref_vals = lax.top_k(ref_rough, k)[0]
    got = jnp.sort(ts, axis=1)[:, ::-1]
    ref = jnp.sort(ref_vals, axis=1)[:, ::-1]
    assert bool(jnp.allclose(got, ref, atol=1e-2, rtol=1e-2)), f"{name}: top-k values mismatch"
    gathered = jnp.take_along_axis(ref_rough, ti.astype(jnp.int32), axis=1)
    assert bool(jnp.allclose(gathered, ts, atol=1e-2, rtol=1e-2)), f"{name}: top-k indices mismatch"


if __name__ == "__main__":
    N, F, ROUGH_K = 16, 32, 4
    key = jax.random.PRNGKey(0)
    k_param, k_ment, k_new = jax.random.split(key, 3)

    scorer = IncrementalRoughScorerPallas(F, ROUGH_K, k_param)
    mentions = jax.random.normal(k_ment, (N, F), jnp.float32)

    # --- first window ---
    ts, ti = scorer(mentions, first=True, window_size=N)
    jax.block_until_ready((ts, ti))
    assert ts.shape == (N, ROUGH_K) and ti.shape == (N, ROUGH_K)

    ref_ws, ref_bs, ref_rough = _ref_first(mentions, scorer.weight, scorer.bias)
    _check("first", ts, ti, ref_rough, ROUGH_K)

    # --- a few incremental (sliding-window) steps, validated against the spec ---
    cur = mentions
    for step, kk in enumerate(jax.random.split(k_new, 3)):
        new_m = jax.random.normal(kk, (1, F), jnp.float32)
        cur = jnp.concatenate([cur[1:], new_m], axis=0)
        ts, ti = scorer(cur, first=False, window_size=N)
        jax.block_until_ready((ts, ti))
        assert ts.shape == (N, ROUGH_K) and ti.shape == (N, ROUGH_K)
        ref_ws, ref_bs, ref_rough = _ref_incr(new_m, ref_ws, ref_bs, scorer.weight, scorer.bias)
        _check(f"incremental step {step}", ts, ti, ref_rough, ROUGH_K)

    print("KERNEL_OK")
</pallas_src>

<mosaic_0001>
module attributes {stable_mosaic.version = 11 : i64} {
  func.func @_first_kernel(%arg0: i32, %arg1: memref<16x128xbf16, #tpu.memory_space<vmem>>, %arg2: memref<16x128xbf16, #tpu.memory_space<vmem>>, %arg3: memref<128x128xbf16, #tpu.memory_space<vmem>>, %arg4: memref<1x128xf32, #tpu.memory_space<vmem>>, %arg5: memref<16x128xf32, #tpu.memory_space<vmem>>, %arg6: memref<16x128xi32, #tpu.memory_space<vmem>>, %arg7: memref<16x128xf32, #tpu.memory_space<vmem>>, %arg8: memref<16x16xf32, #tpu.memory_space<vmem>>) attributes {dimension_semantics = [#tpu.dimension_semantics<parallel>], iteration_bounds = array<i64: 1>, scalar_prefetch = 0 : i64, scratch_operands = 0 : i64, tpu.core_type = #tpu.core_type<tc>, window_params = [{transform_indices = @transform_0, window_bounds = array<i64: 16, 128>}, {pipeline_mode = #tpu.pipeline_mode<synchronous>, transform_indices = @transform_1, window_bounds = array<i64: 16, 128>}, {pipeline_mode = #tpu.pipeline_mode<synchronous>, transform_indices = @transform_2, window_bounds = array<i64: 128, 128>}, {pipeline_mode = #tpu.pipeline_mode<synchronous>, transform_indices = @transform_3, window_bounds = array<i64: 1, 128>}, {transform_indices = @transform_4, window_bounds = array<i64: 16, 128>}, {transform_indices = @transform_5, window_bounds = array<i64: 16, 128>}, {transform_indices = @transform_6, window_bounds = array<i64: 16, 128>}, {transform_indices = @transform_7, window_bounds = array<i64: 16, 16>}]} {
    %c0 = arith.constant 0 : index
    %c0_0 = arith.constant 0 : index
    %0 = vector.load %arg1[%c0, %c0_0] : memref<16x128xbf16, #tpu.memory_space<vmem>>, vector<16x128xbf16>
    %c0_1 = arith.constant 0 : index
    %c0_2 = arith.constant 0 : index
    %1 = vector.load %arg3[%c0_1, %c0_2] : memref<128x128xbf16, #tpu.memory_space<vmem>>, vector<128x128xbf16>
    %cst = arith.constant dense<0.000000e+00> : vector<16x128xf32>
    %2 = tpu.matmul %0, %1, %cst {dimension_numbers = #tpu.dot_dimension_numbers<[1], [1], [0], [0], [0, 0, 1, 0], [], []>} : vector<16x128xbf16>, vector<128x128xbf16>, vector<16x128xf32> -> vector<16x128xf32>
    %c0_3 = arith.constant 0 : index
    %c0_4 = arith.constant 0 : index
    %3 = vector.load %arg4[%c0_3, %c0_4] : memref<1x128xf32, #tpu.memory_space<vmem>>, vector<1x128xf32>
    %4 = vector.broadcast %3 : vector<1x128xf32> to vector<16x128xf32>
    %5 = arith.addf %2, %4 : vector<16x128xf32>
    %6 = arith.truncf %5 : vector<16x128xf32> to vector<16x128xbf16>
    %c0_5 = arith.constant 0 : index
    %c0_6 = arith.constant 0 : index
    %7 = vector.load %arg2[%c0_5, %c0_6] : memref<16x128xbf16, #tpu.memory_space<vmem>>, vector<16x128xbf16>
    %cst_7 = arith.constant dense<0.000000e+00> : vector<16x16xf32>
    %8 = tpu.matmul %6, %7, %cst_7 {dimension_numbers = #tpu.dot_dimension_numbers<[1], [1], [0], [0], [0, 0, 1, 0], [], []>} : vector<16x128xbf16>, vector<16x128xbf16>, vector<16x16xf32> -> vector<16x16xf32>
    %c16_i32 = arith.constant 16 : i32
    %9 = arith.muli %arg0, %c16_i32 : i32
    %10 = tpu.iota {dimensions = array<i32: 0>} : vector<16x1xi32>
    %11 = vector.broadcast %9 : i32 to vector<16x1xi32>
    %12 = arith.addi %11, %10 : vector<16x1xi32>
    %13 = tpu.iota {dimensions = array<i32: 1>} : vector<16x16xi32>
    %14 = vector.broadcast %12 : vector<16x1xi32> to vector<16x16xi32>
    %15 = arith.cmpi slt, %13, %14 : vector<16x16xi32>
    %cst_8 = arith.constant -3.000000e+38 : f32
    %16 = vector.broadcast %cst_8 : f32 to vector<16x16xf32>
    %17 = arith.maximumf %8, %16 : vector<16x16xf32>
    %cst_9 = arith.constant -3.000000e+38 : f32
    %18 = vector.broadcast %cst_9 : f32 to vector<16x16xf32>
    %19 = arith.select %15, %17, %18 : vector<16x16xi1>, vector<16x16xf32>
    %20 = tpu.iota {dimensions = array<i32: 1>} : vector<16x128xi32>
    %cst_10 = arith.constant 0xFF800000 : f32
    %21 = vector.broadcast %cst_10 : f32 to vector<16x128xf32>
    %c0_i32 = arith.constant 0 : i32
    %22 = vector.broadcast %c0_i32 : i32 to vector<16x128xi32>
    %cst_11 = arith.constant dense<0xFF800000> : vector<16xf32>
    %23 = vector.multi_reduction <maximumf>, %19, %cst_11 [1] : vector<16x16xf32> to vector<16xf32>
    %24 = vector.shape_cast %23 : vector<16xf32> to vector<16x1xf32>
    %25 = vector.broadcast %24 : vector<16x1xf32> to vector<16x16xf32>
    %26 = arith.cmpf oeq, %19, %25 : vector<16x16xf32>
    %c16_i32_12 = arith.constant 16 : i32
    %27 = vector.broadcast %c16_i32_12 : i32 to vector<16x16xi32>
    %28 = arith.select %26, %13, %27 : vector<16x16xi1>, vector<16x16xi32>
    %cst_13 = arith.constant dense<2147483647> : vector<16xi32>
    %29 = vector.multi_reduction <minsi>, %28, %cst_13 [1] : vector<16x16xi32> to vector<16xi32>
    %30 = vector.shape_cast %29 : vector<16xi32> to vector<16x1xi32>
    %31 = vector.broadcast %30 : vector<16x1xi32> to vector<16x16xi32>
    %32 = arith.cmpi eq, %13, %31 : vector<16x16xi32>
    %cst_14 = arith.constant 0xFF800000 : f32
    %33 = vector.broadcast %cst_14 : f32 to vector<16x16xf32>
    %34 = arith.select %32, %33, %19 : vector<16x16xi1>, vector<16x16xf32>
    %c0_i32_15 = arith.constant 0 : i32
    %35 = vector.broadcast %c0_i32_15 : i32 to vector<16x128xi32>
    %36 = arith.cmpi eq, %20, %35 : vector<16x128xi32>
    %37 = vector.shape_cast %24 : vector<16x1xf32> to vector<16x1xf32>
    %38 = vector.broadcast %37 : vector<16x1xf32> to vector<16x128xf32>
    %39 = arith.select %36, %38, %21 : vector<16x128xi1>, vector<16x128xf32>
    %c0_i32_16 = arith.constant 0 : i32
    %40 = vector.broadcast %c0_i32_16 : i32 to vector<16x128xi32>
    %41 = arith.cmpi eq, %20, %40 : vector<16x128xi32>
    %42 = vector.shape_cast %30 : vector<16x1xi32> to vector<16x1xi32>
    %43 = vector.broadcast %42 : vector<16x1xi32> to vector<16x128xi32>
    %44 = arith.select %41, %43, %22 : vector<16x128xi1>, vector<16x128xi32>
    %cst_17 = arith.constant dense<0xFF800000> : vector<16xf32>
    %45 = vector.multi_reduction <maximumf>, %34, %cst_17 [1] : vector<16x16xf32> to vector<16xf32>
    %46 = vector.shape_cast %45 : vector<16xf32> to vector<16x1xf32>
    %47 = vector.broadcast %46 : vector<16x1xf32> to vector<16x16xf32>
    %48 = arith.cmpf oeq, %34, %47 : vector<16x16xf32>
    %c16_i32_18 = arith.constant 16 : i32
    %49 = vector.broadcast %c16_i32_18 : i32 to vector<16x16xi32>
    %50 = arith.select %48, %13, %49 : vector<16x16xi1>, vector<16x16xi32>
    %cst_19 = arith.constant dense<2147483647> : vector<16xi32>
    %51 = vector.multi_reduction <minsi>, %50, %cst_19 [1] : vector<16x16xi32> to vector<16xi32>
    %52 = vector.shape_cast %51 : vector<16xi32> to vector<16x1xi32>
    %53 = vector.broadcast %52 : vector<16x1xi32> to vector<16x16xi32>
    %54 = arith.cmpi eq, %13, %53 : vector<16x16xi32>
    %cst_20 = arith.constant 0xFF800000 : f32
    %55 = vector.broadcast %cst_20 : f32 to vector<16x16xf32>
    %56 = arith.select %54, %55, %34 : vector<16x16xi1>, vector<16x16xf32>
    %c1_i32 = arith.constant 1 : i32
    %57 = vector.broadcast %c1_i32 : i32 to vector<16x128xi32>
    %58 = arith.cmpi eq, %20, %57 : vector<16x128xi32>
    %59 = vector.shape_cast %46 : vector<16x1xf32> to vector<16x1xf32>
    %60 = vector.broadcast %59 : vector<16x1xf32> to vector<16x128xf32>
    %61 = arith.select %58, %60, %39 : vector<16x128xi1>, vector<16x128xf32>
    %c1_i32_21 = arith.constant 1 : i32
    %62 = vector.broadcast %c1_i32_21 : i32 to vector<16x128xi32>
    %63 = arith.cmpi eq, %20, %62 : vector<16x128xi32>
    %64 = vector.shape_cast %52 : vector<16x1xi32> to vector<16x1xi32>
    %65 = vector.broadcast %64 : vector<16x1xi32> to vector<16x128xi32>
    %66 = arith.select %63, %65, %44 : vector<16x128xi1>, vector<16x128xi32>
    %cst_22 = arith.constant dense<0xFF800000> : vector<16xf32>
    %67 = vector.multi_reduction <maximumf>, %56, %cst_22 [1] : vector<16x16xf32> to vector<16xf32>
    %68 = vector.shape_cast %67 : vector<16xf32> to vector<16x1xf32>
    %69 = vector.broadcast %68 : vector<16x1xf32> to vector<16x16xf32>
    %70 = arith.cmpf oeq, %56, %69 : vector<16x16xf32>
    %c16_i32_23 = arith.constant 16 : i32
    %71 = vector.broadcast %c16_i32_23 : i32 to vector<16x16xi32>
    %72 = arith.select %70, %13, %71 : vector<16x16xi1>, vector<16x16xi32>
    %cst_24 = arith.constant dense<2147483647> : vector<16xi32>
    %73 = vector.multi_reduction <minsi>, %72, %cst_24 [1] : vector<16x16xi32> to vector<16xi32>
    %74 = vector.shape_cast %73 : vector<16xi32> to vector<16x1xi32>
    %75 = vector.broadcast %74 : vector<16x1xi32> to vector<16x16xi32>
    %76 = arith.cmpi eq, %13, %75 : vector<16x16xi32>
    %cst_25 = arith.constant 0xFF800000 : f32
    %77 = vector.broadcast %cst_25 : f32 to vector<16x16xf32>
    %78 = arith.select %76, %77, %56 : vector<16x16xi1>, vector<16x16xf32>
    %c2_i32 = arith.constant 2 : i32
    %79 = vector.broadcast %c2_i32 : i32 to vector<16x128xi32>
    %80 = arith.cmpi eq, %20, %79 : vector<16x128xi32>
    %81 = vector.shape_cast %68 : vector<16x1xf32> to vector<16x1xf32>
    %82 = vector.broadcast %81 : vector<16x1xf32> to vector<16x128xf32>
    %83 = arith.select %80, %82, %61 : vector<16x128xi1>, vector<16x128xf32>
    %c2_i32_26 = arith.constant 2 : i32
    %84 = vector.broadcast %c2_i32_26 : i32 to vector<16x128xi32>
    %85 = arith.cmpi eq, %20, %84 : vector<16x128xi32>
    %86 = vector.shape_cast %74 : vector<16x1xi32> to vector<16x1xi32>
    %87 = vector.broadcast %86 : vector<16x1xi32> to vector<16x128xi32>
    %88 = arith.select %85, %87, %66 : vector<16x128xi1>, vector<16x128xi32>
    %cst_27 = arith.constant dense<0xFF800000> : vector<16xf32>
    %89 = vector.multi_reduction <maximumf>, %78, %cst_27 [1] : vector<16x16xf32> to vector<16xf32>
    %90 = vector.shape_cast %89 : vector<16xf32> to vector<16x1xf32>
    %91 = vector.broadcast %90 : vector<16x1xf32> to vector<16x16xf32>
    %92 = arith.cmpf oeq, %78, %91 : vector<16x16xf32>
    %c16_i32_28 = arith.constant 16 : i32
    %93 = vector.broadcast %c16_i32_28 : i32 to vector<16x16xi32>
    %94 = arith.select %92, %13, %93 : vector<16x16xi1>, vector<16x16xi32>
    %cst_29 = arith.constant dense<2147483647> : vector<16xi32>
    %95 = vector.multi_reduction <minsi>, %94, %cst_29 [1] : vector<16x16xi32> to vector<16xi32>
    %96 = vector.shape_cast %95 : vector<16xi32> to vector<16x1xi32>
    %c3_i32 = arith.constant 3 : i32
    %97 = vector.broadcast %c3_i32 : i32 to vector<16x128xi32>
    %98 = arith.cmpi eq, %20, %97 : vector<16x128xi32>
    %99 = vector.shape_cast %90 : vector<16x1xf32> to vector<16x1xf32>
    %100 = vector.broadcast %99 : vector<16x1xf32> to vector<16x128xf32>
    %101 = arith.select %98, %100, %83 : vector<16x128xi1>, vector<16x128xf32>
    %c3_i32_30 = arith.constant 3 : i32
    %102 = vector.broadcast %c3_i32_30 : i32 to vector<16x128xi32>
    %103 = arith.cmpi eq, %20, %102 : vector<16x128xi32>
    %104 = vector.shape_cast %96 : vector<16x1xi32> to vector<16x1xi32>
    %105 = vector.broadcast %104 : vector<16x1xi32> to vector<16x128xi32>
    %106 = arith.select %103, %105, %88 : vector<16x128xi1>, vector<16x128xi32>
    %cst_31 = arith.constant -9.99999968E+37 : f32
    %107 = vector.broadcast %cst_31 : f32 to vector<16x128xf32>
    %108 = arith.cmpf ole, %101, %107 : vector<16x128xf32>
    %cst_32 = arith.constant 0xFF800000 : f32
    %109 = vector.broadcast %cst_32 : f32 to vector<16x128xf32>
    %110 = arith.select %108, %109, %101 : vector<16x128xi1>, vector<16x128xf32>
    %c0_33 = arith.constant 0 : index
    %c0_34 = arith.constant 0 : index
    %111 = vector.load %arg5[%c0_33, %c0_34] : memref<16x128xf32, #tpu.memory_space<vmem>>, vector<16x128xf32>
    tpu.vector_store %arg5[%c0_33, %c0_34], %110 {strides = array<i32>} : memref<16x128xf32, #tpu.memory_space<vmem>>, vector<16x128xf32>,
    %c0_35 = arith.constant 0 : index
    %c0_36 = arith.constant 0 : index
    %112 = vector.load %arg6[%c0_35, %c0_36] : memref<16x128xi32, #tpu.memory_space<vmem>>, vector<16x128xi32>
    tpu.vector_store %arg6[%c0_35, %c0_36], %106 {strides = array<i32>} : memref<16x128xi32, #tpu.memory_space<vmem>>, vector<16x128xi32>,
    %c0_37 = arith.constant 0 : index
    %c0_38 = arith.constant 0 : index
    %113 = vector.load %arg7[%c0_37, %c0_38] : memref<16x128xf32, #tpu.memory_space<vmem>>, vector<16x128xf32>
    tpu.vector_store %arg7[%c0_37, %c0_38], %5 {strides = array<i32>} : memref<16x128xf32, #tpu.memory_space<vmem>>, vector<16x128xf32>,
    %c0_39 = arith.constant 0 : index
    %c0_40 = arith.constant 0 : index
    %114 = vector.load %arg8[%c0_39, %c0_40] : memref<16x16xf32, #tpu.memory_space<vmem>>, vector<16x16xf32>
    tpu.vector_store %arg8[%c0_39, %c0_40], %8 {strides = array<i32>} : memref<16x16xf32, #tpu.memory_space<vmem>>, vector<16x16xf32>,
    return
  }
  func.func @transform_0(%arg0: i32) -> (i32, i32) {
    %c0_i32 = arith.constant 0 : i32
    %c0_i32_0 = arith.constant 0 : i32
    return %arg0, %c0_i32 : i32, i32
  }
  func.func @transform_1(%arg0: i32) -> (i32, i32) {
    %c0_i32 = arith.constant 0 : i32
    %c0_i32_0 = arith.constant 0 : i32
    %c0_i32_1 = arith.constant 0 : i32
    return %c0_i32, %c0_i32_0 : i32, i32
  }
  func.func @transform_2(%arg0: i32) -> (i32, i32) {
    %c0_i32 = arith.constant 0 : i32
    %c0_i32_0 = arith.constant 0 : i32
    %c0_i32_1 = arith.constant 0 : i32
    return %c0_i32, %c0_i32_0 : i32, i32
  }
  func.func @transform_3(%arg0: i32) -> (i32, i32) {
    %c0_i32 = arith.constant 0 : i32
    %c0_i32_0 = arith.constant 0 : i32
    %c0_i32_1 = arith.constant 0 : i32
    return %c0_i32, %c0_i32_0 : i32, i32
  }
  func.func @transform_4(%arg0: i32) -> (i32, i32) {
    %c0_i32 = arith.constant 0 : i32
    %c0_i32_0 = arith.constant 0 : i32
    return %arg0, %c0_i32 : i32, i32
  }
  func.func @transform_5(%arg0: i32) -> (i32, i32) {
    %c0_i32 = arith.constant 0 : i32
    %c0_i32_0 = arith.constant 0 : i32
    return %arg0, %c0_i32 : i32, i32
  }
  func.func @transform_6(%arg0: i32) -> (i32, i32) {
    %c0_i32 = arith.constant 0 : i32
    %c0_i32_0 = arith.constant 0 : i32
    return %arg0, %c0_i32 : i32, i32
  }
  func.func @transform_7(%arg0: i32) -> (i32, i32) {
    %c0_i32 = arith.constant 0 : i32
    %c0_i32_0 = arith.constant 0 : i32
    return %arg0, %c0_i32 : i32, i32
  }
}

</mosaic_0001>

<llo_original>
// kernel: _first_call.1
$region0: #{_first_call.1}
  #allocation0 [shape = 'u32[]', space=smem, size = 0x4, offset = 0x4, fixed_abs, tag = 'smem constant byte address 0x4 - core index']
  #allocation1 [shape = 'u32[144,128]{1,0:T(1,128)}', space=vmem, size = 0x12000, scoped, tag = 'internal scratch']
  %s0 = inlined_call_operand.hbm [shape: bf16[16,128], index: 0, kind: input, shape index: {}, may-alias: {0,1}]
  %s1 = inlined_call_operand.hbm [shape: bf16[16,128], index: 1, kind: input, shape index: {}, may-alias: {0,1}]
  %s2 = inlined_call_operand.hbm [shape: bf16[128,128], index: 2, kind: input, shape index: {}]
  %s3 = inlined_call_operand.vmem [shape: f32[1,128], index: 3, kind: input, shape index: {}]
  %s4 = inlined_call_operand.vmem [shape: f32[16,128], index: 4, kind: output, shape index: {0}]
  %s5 = inlined_call_operand.vmem [shape: s32[16,128], index: 5, kind: output, shape index: {1}]
  %s6 = inlined_call_operand.hbm [shape: f32[16,128], index: 6, kind: output, shape index: {2}]
  %s7 = inlined_call_operand.hbm [shape: f32[16,16], index: 7, kind: output, shape index: {3}]
  %8 = xla_tuple %s4, %s5, %s6, %s7
  %s9 = sld [smem:[#allocation0]]
  $region62: #{_first_call.1} parent=0
    _
  %s11 = ssub.s32 1, %s9
  %s12 = scalar_select 0, %s11, %s9
  $region1: #{_first_call.1} parent=0
    #allocation2 [shape = 'u8[4096]{0}', space=vmem, size = 0x1000, scoped, tag = 'input window, operand 0, single buffered']
    #allocation3 [shape = 's32[1]{0}', space=sflag, size = 0x4, scoped, tag = 'scoped memory for _first_call.1']
    #allocation4 [shape = 's32[1]{0}', space=sflag, size = 0x4, scoped, tag = 'scoped memory for _first_call.1']
    #allocation5 [shape = 'u8[4096]{0}', space=vmem, size = 0x1000, scoped, tag = 'input window, operand 1, single buffered']
    #allocation6 [shape = 's32[1]{0}', space=sflag, size = 0x4, scoped, tag = 'scoped memory for _first_call.1']
    #allocation7 [shape = 'u8[32768]{0}', space=vmem, size = 0x8000, scoped, tag = 'input window, operand 2, single buffered']
    #allocation8 [shape = 'u8[8192]{0}', space=vmem, size = 0x2000, scoped, tag = 'output window, operand 2, single buffered']
    #allocation9 [shape = 'u8[8192]{0}', space=vmem, size = 0x2000, scoped, tag = 'output window, operand 3, single buffered']
    #allocation10 [shape = 's32[1]{0}', space=sflag, size = 0x4, scoped, tag = 'scoped memory for _first_call.1']
    %13 = vsyncpa [#allocation3], 0
    %14 = vsyncpa [#allocation6], 0
    %15 = vsyncpa [#allocation4], 0
    %16 = vsyncpa [#allocation10], 0
    // Predicated region
    $region2: #{_first_call.1} parent=1 // pred_check
      _
    $region3: #{_first_call.1} parent=1 // pred_check_branch
      %18 = sbr.rel (0) target = $region5
    $region4: #{_first_call.1} parent=1 // pred_region
      %s20 = ssub.s32 128, 128
      %21 = vsyncadd [#allocation3], %s20
      %s22 = sshll.u32 [#allocation2], 4
      %s23 = int_to_ptr.vmem [resolvable:$true] %s22
      %28 = dma.hbm_to_vmem [thread:$0]  %s0, 128, %s23, [#allocation3], 64, 64, 4
    $region5: #{_first_call.1} parent=1 // pred_fallthru
      _
    // Predicated region
    $region6: #{_first_call.1} parent=1 // pred_check
      _
    $region7: #{_first_call.1} parent=1 // pred_check_branch
      %30 = sbr.rel (0) target = $region9
    $region8: #{_first_call.1} parent=1 // pred_region
      %s32 = ssub.s32 128, 128
      %33 = vsyncadd [#allocation6], %s32
      %s34 = sshll.u32 [#allocation5], 4
      %s35 = int_to_ptr.vmem [resolvable:$true] %s34
      %40 = dma.hbm_to_vmem [thread:$0]  %s1, 128, %s35, [#allocation6], 64, 64, 4
    $region9: #{_first_call.1} parent=1 // pred_fallthru
      _
    // Predicated region
    $region10: #{_first_call.1} parent=1 // pred_check
      _
    $region11: #{_first_call.1} parent=1 // pred_check_branch
      %42 = sbr.rel (0) target = $region13
    $region12: #{_first_call.1} parent=1 // pred_region
      %s44 = ssub.s32 1024, 1024
      %45 = vsyncadd [#allocation6], %s44
      %s46 = sshll.u32 [#allocation7], 4
      %s47 = int_to_ptr.vmem [resolvable:$true] %s46
      %52 = dma.hbm_to_vmem [thread:$0]  %s2, 1024, %s47, [#allocation6], 64, 64, 4
    $region13: #{_first_call.1} parent=1 // pred_fallthru
      _
    // Predicated region
    $region14: #{_first_call.1} parent=1 // pred_check
      _
    $region15: #{_first_call.1} parent=1 // pred_check_branch
      %54 = sbr.rel (0) target = $region17
    $region16: #{_first_call.1} parent=1 // pred_region
      _
    $region17: #{_first_call.1} parent=1 // pred_fallthru
      _
    // Predicated region
    $region18: #{_first_call.1} parent=1 // pred_check
      _
    $region19: #{_first_call.1} parent=1 // pred_check_branch
      %56 = sbr.rel (0) target = $region21
    $region20: #{_first_call.1} parent=1 // pred_region
      %57 = dma.done [#allocation3], 128
    $region21: #{_first_call.1} parent=1 // pred_fallthru
      _
    // Predicated region
    $region22: #{_first_call.1} parent=1 // pred_check
      _
    $region23: #{_first_call.1} parent=1 // pred_check_branch
      %59 = sbr.rel (0) target = $region25
    $region24: #{_first_call.1} parent=1 // pred_region
      %60 = dma.done [#allocation6], 128
    $region25: #{_first_call.1} parent=1 // pred_fallthru
      _
    // Predicated region
    $region26: #{_first_call.1} parent=1 // pred_check
      _
    $region27: #{_first_call.1} parent=1 // pred_check_branch
      %62 = sbr.rel (0) target = $region29
    $region28: #{_first_call.1} parent=1 // pred_region
      %63 = dma.done [#allocation6], 1024
    $region29: #{_first_call.1} parent=1 // pred_fallthru
      _
    %v65 = vld [vmem:[#allocation2] sm:$0xf]
    %v66 = vld [vmem:[#allocation2 + $0x4] sm:$0xf]
    %v67 = vld [vmem:[#allocation7] sm:$0xf]
    %v68 = vld [vmem:[#allocation7 + $0x4] sm:$0xf]
    %v69 = vld [vmem:[#allocation7 + $0x8] sm:$0xf]
    %v70 = vld [vmem:[#allocation7 + $0xc] sm:$0xf]
    %v71 = vld [vmem:[#allocation7 + $0x10] sm:$0xf]
    %v72 = vld [vmem:[#allocation7 + $0x14] sm:$0xf]
    %v73 = vld [vmem:[#allocation7 + $0x18] sm:$0xf]
    %v74 = vld [vmem:[#allocation7 + $0x1c] sm:$0xf]
    %v75 = vld [vmem:[#allocation7 + $0x20] sm:$0xf]
    %v76 = vld [vmem:[#allocation7 + $0x24] sm:$0xf]
    %v77 = vld [vmem:[#allocation7 + $0x28] sm:$0xf]
    %v78 = vld [vmem:[#allocation7 + $0x2c] sm:$0xf]
    %v79 = vld [vmem:[#allocation7 + $0x30] sm:$0xf]
    %v80 = vld [vmem:[#allocation7 + $0x34] sm:$0xf]
    %v81 = vld [vmem:[#allocation7 + $0x38] sm:$0xf]
    %v82 = vld [vmem:[#allocation7 + $0x3c] sm:$0xf]
    %v83 = vld [vmem:[%s3] sm:$0x1]
    %v85 = vlaneseq
    %v86 = vshrl.u32 %v85, 7
    %v87 = vsub.s32 0, %v86
    %v88 = vrot.slane %v83, %v87
    %v92 = vunpack.c.l.b16 %v65
    %v93 = vunpack.c.l.b16 %v66
    %v94 = vpack.c.b16 %v93, %v92
    %v112 = vunpack.c.l.b16 %v67
    %v113 = vunpack.c.l.b16 %v68
    %v114 = vunpack.c.l.b16 %v69
    %v115 = vunpack.c.l.b16 %v70
    %v116 = vunpack.c.l.b16 %v71
    %v117 = vunpack.c.l.b16 %v72
    %v118 = vunpack.c.l.b16 %v73
    %v119 = vunpack.c.l.b16 %v74
    %v120 = vunpack.c.l.b16 %v75
    %v121 = vunpack.c.l.b16 %v76
    %v122 = vunpack.c.l.b16 %v77
    %v123 = vunpack.c.l.b16 %v78
    %v124 = vunpack.c.l.b16 %v79
    %v125 = vunpack.c.l.b16 %v80
    %v126 = vunpack.c.l.b16 %v81
    %v127 = vunpack.c.l.b16 %v82
    %v128 = vpack.c.b16 %v113, %v112
    %v129 = vpack.c.b16 %v115, %v114
    %v130 = vpack.c.b16 %v117, %v116
    %v131 = vpack.c.b16 %v119, %v118
    %v132 = vpack.c.b16 %v121, %v120
    %v133 = vpack.c.b16 %v123, %v122
    %v134 = vpack.c.b16 %v125, %v124
    %v135 = vpack.c.b16 %v127, %v126
    %144 = vmatprep.subr.bf16.mxu0 0
    %145 = vmatpush1.bf16.xpose.msra.mxu0 %v135
    %146 = vmatprep.subr.bf16.mxu0 0
    %147 = vmatpush1.bf16.xpose.msra.mxu0 %v134
    %148 = vmatprep.subr.bf16.mxu0 0
    %149 = vmatpush1.bf16.xpose.msra.mxu0 %v133
    %150 = vmatprep.subr.bf16.mxu0 0
    %151 = vmatpush1.bf16.xpose.msra.mxu0 %v132
    %152 = vmatprep.subr.bf16.mxu0 0
    %153 = vmatpush1.bf16.xpose.msra.mxu0 %v131
    %154 = vmatprep.subr.bf16.mxu0 0
    %155 = vmatpush1.bf16.xpose.msra.mxu0 %v130
    %156 = vmatprep.subr.bf16.mxu0 0
    %157 = vmatpush1.bf16.xpose.msra.mxu0 %v129
    %158 = vmatprep.subr.bf16.mxu0 0
    %159 = vmatpush1.bf16.xpose.msra.mxu0 %v128
    %160 = vmatprep.subr.bf16.mxu0 0
    %161 = vmatpush2.bf16.xpose.msra.mxu0 0
    %162 = vmatprep.subr.bf16.mxu0 0
    %163 = vmatpush2.bf16.xpose.msra.mxu0 0
    %164 = vmatprep.subr.bf16.mxu0 0
    %165 = vmatpush2.bf16.xpose.msra.mxu0 0
    %166 = vmatprep.subr.bf16.mxu0 0
    %167 = vmatpush2.bf16.xpose.msra.mxu0 0
    %168 = vmatprep.subr.bf16.mxu0 0
    %169 = vmatpush2.bf16.xpose.msra.mxu0 0
    %170 = vmatprep.subr.bf16.mxu0 0
    %171 = vmatpush2.bf16.xpose.msra.mxu0 0
    %172 = vmatprep.subr.bf16.mxu0 0
    %173 = vmatpush2.bf16.xpose.msra.mxu0 0
    %174 = vmatprep.subr.bf16.mxu0 0
    %175 = vmatpush2.bf16.xpose.msra.mxu0 0
    %176 = vmatprep.mubr.bf16.mxu0 0
    %177 = vmatmul.mubr.bf16.gmra.mxu0 %v94
    %v178 = vpop.f32.mrf.mxu0
    %v179 = vadd.f32 %v88, %v178
    %v180 = vpop.f32.mrf.mxu0
    %v181 = vpop.f32.mrf.mxu0
    %v182 = vadd.f32 %v88, %v181
    %v183 = vpop.f32.mrf.mxu0
    %184 = vdwg.mxu0
    %v185 = vpack.c.bf16 %v182, %v179
    %v186 = vld [vmem:[#allocation5] sm:$0xf]
    %v187 = vld [vmem:[#allocation5 + $0x4] sm:$0xf]
    %v190 = vunpack.c.l.b16 %v186
    %v191 = vunpack.c.l.b16 %v187
    %v192 = vpack.c.b16 %v191, %v190
    %194 = vmatprep.subr.bf16.mxu0 0
    %195 = vmatpush1.bf16.xpose.msra.mxu0 0
    %196 = vmatprep.subr.bf16.mxu0 0
    %197 = vmatpush1.bf16.xpose.msra.mxu0 0
    %198 = vmatprep.subr.bf16.mxu0 0
    %199 = vmatpush1.bf16.xpose.msra.mxu0 0
    %200 = vmatprep.subr.bf16.mxu0 0
    %201 = vmatpush1.bf16.xpose.msra.mxu0 0
    %202 = vmatprep.subr.bf16.mxu0 0
    %203 = vmatpush1.bf16.xpose.msra.mxu0 0
    %204 = vmatprep.subr.bf16.mxu0 0
    %205 = vmatpush1.bf16.xpose.msra.mxu0 0
    %206 = vmatprep.subr.bf16.mxu0 0
    %207 = vmatpush1.bf16.xpose.msra.mxu0 0
    %208 = vmatprep.subr.bf16.mxu0 0
    %209 = vmatpush1.bf16.xpose.msra.mxu0 %v192
    %210 = vmatprep.subr.bf16.mxu0 0
    %211 = vmatpush2.bf16.xpose.msra.mxu0 0
    %212 = vmatprep.subr.bf16.mxu0 0
    %213 = vmatpush2.bf16.xpose.msra.mxu0 0
    %214 = vmatprep.subr.bf16.mxu0 0
    %215 = vmatpush2.bf16.xpose.msra.mxu0 0
    %216 = vmatprep.subr.bf16.mxu0 0
    %217 = vmatpush2.bf16.xpose.msra.mxu0 0
    %218 = vmatprep.subr.bf16.mxu0 0
    %219 = vmatpush2.bf16.xpose.msra.mxu0 0
    %220 = vmatprep.subr.bf16.mxu0 0
    %221 = vmatpush2.bf16.xpose.msra.mxu0 0
    %222 = vmatprep.subr.bf16.mxu0 0
    %223 = vmatpush2.bf16.xpose.msra.mxu0 0
    %224 = vmatprep.subr.bf16.mxu0 0
    %225 = vmatpush2.bf16.xpose.msra.mxu0 0
    %226 = vmatprep.mubr.bf16.mxu0 0
    %227 = vmatmul.mubr.bf16.gmra.mxu0 %v185
    %v228 = vpop.f32.mrf.mxu0
    %v229 = vadd.f32 0.0, %v228
    %v230 = vpop.f32.mrf.mxu0
    %v231 = vpop.f32.mrf.mxu0
    %v232 = vadd.f32 0.0, %v231
    %v233 = vpop.f32.mrf.mxu0
    %234 = vdwg.mxu0
    %s235 = smul.u32 0, 16
    %v236 = vlaneseq
    %v237 = vshrl.u32 %v236, 7
    %v238 = vadd.s32 %v237, 8
    %v239 = vstv %s235
    %v240 = vadd.s32 %v239, %v237
    %v241 = vadd.s32 %v239, %v238
    %v242 = vlaneseq
    %v243 = vand.u32 %v242, 127
    %vm244 = vcmp.lt.s32.totalorder %v243, %v240
    %vm245 = vcmp.lt.s32.totalorder %v243, %v241
    %v246 = vmax.f32 %v229, -3e+38
    %v247 = vmax.f32 %v232, -3e+38
    %v248 = vsel %vm244, %v246, -3e+38
    %v249 = vsel %vm245, %v247, -3e+38
    %vm250 = vcmask 130048
    %v251 = vsel %vm250, %v248, -inf
    %252 = vmax.xlane.f32.xlu0 %v251
    %v253 = vpop.xlane.xlu0 %252
    %v254 = vsel %vm250, %v249, -inf
    %255 = vmax.xlane.f32.xlu0 %v254
    %v256 = vpop.xlane.xlu0 %255
    %vm257 = vcmp.eq.f32.partialorder %v248, %v253
    %vm258 = vcmp.eq.f32.partialorder %v249, %v256
    %v259 = vsel %vm257, %v243, 16
    %v260 = vsel %vm258, %v243, 16
    %v261 = vsel %vm250, %v259, 2147483647
    %v262 = vand.u32 %v261, 65535
    %v263 = vshra.s32 %v261, 16
    %v264 = vcvt.s32.f32 %v262
    %v265 = vcvt.s32.f32 %v263
    %266 = vmin.xlane.f32.xlu0 %v265
    %v267 = vpop.xlane.xlu0 %266
    %vm268 = vcmp.eq.f32.partialorder %v265, %v267
    %v269 = vsel %vm268, %v264, inf
    %270 = vmin.xlane.f32.xlu0 %v269
    %v271 = vpop.xlane.xlu0 %270
    %v272 = vcvt.f32.s32 %v271
    %v273 = vcvt.f32.s32 %v267
    %v274 = vshll.u32 %v273, 16
    %v275 = vadd.s32 %v274, %v272
    %v276 = vsel %vm250, %v260, 2147483647
    %v277 = vand.u32 %v276, 65535
    %v278 = vshra.s32 %v276, 16
    %v279 = vcvt.s32.f32 %v277
    %v280 = vcvt.s32.f32 %v278
    %281 = vmin.xlane.f32.xlu0 %v280
    %v282 = vpop.xlane.xlu0 %281
    %vm283 = vcmp.eq.f32.partialorder %v280, %v282
    %v284 = vsel %vm283, %v279, inf
    %285 = vmin.xlane.f32.xlu0 %v284
    %v286 = vpop.xlane.xlu0 %285
    %v287 = vcvt.f32.s32 %v286
    %v288 = vcvt.f32.s32 %v282
    %v289 = vshll.u32 %v288, 16
    %v290 = vadd.s32 %v289, %v287
    %vm291 = vcmp.eq.s32.totalorder %v243, %v275
    %vm292 = vcmp.eq.s32.totalorder %v243, %v290
    %v293 = vsel %vm291, -inf, %v248
    %v294 = vsel %vm292, -inf, %v249
    %vm295 = vcmp.eq.s32.totalorder %v243, 0
    %v296 = vsel %vm295, %v253, -inf
    %v297 = vsel %vm295, %v256, -inf
    %v298 = vsel %vm295, %v275, 0
    %v299 = vsel %vm295, %v290, 0
    %v300 = vsel %vm250, %v293, -inf
    %301 = vmax.xlane.f32.xlu0 %v300
    %v302 = vpop.xlane.xlu0 %301
    %v303 = vsel %vm250, %v294, -inf
    %304 = vmax.xlane.f32.xlu0 %v303
    %v305 = vpop.xlane.xlu0 %304
    %vm306 = vcmp.eq.f32.partialorder %v293, %v302
    %vm307 = vcmp.eq.f32.partialorder %v294, %v305
    %v308 = vsel %vm306, %v243, 16
    %v309 = vsel %vm307, %v243, 16
    %v310 = vsel %vm250, %v308, 2147483647
    %v311 = vand.u32 %v310, 65535
    %v312 = vshra.s32 %v310, 16
    %v313 = vcvt.s32.f32 %v311
    %v314 = vcvt.s32.f32 %v312
    %315 = vmin.xlane.f32.xlu0 %v314
    %v316 = vpop.xlane.xlu0 %315
    %vm317 = vcmp.eq.f32.partialorder %v314, %v316
    %v318 = vsel %vm317, %v313, inf
    %319 = vmin.xlane.f32.xlu0 %v318
    %v320 = vpop.xlane.xlu0 %319
    %v321 = vcvt.f32.s32 %v320
    %v322 = vcvt.f32.s32 %v316
    %v323 = vshll.u32 %v322, 16
    %v324 = vadd.s32 %v323, %v321
    %v325 = vsel %vm250, %v309, 2147483647
    %v326 = vand.u32 %v325, 65535
    %v327 = vshra.s32 %v325, 16
    %v328 = vcvt.s32.f32 %v326
    %v329 = vcvt.s32.f32 %v327
    %330 = vmin.xlane.f32.xlu0 %v329
    %v331 = vpop.xlane.xlu0 %330
    %vm332 = vcmp.eq.f32.partialorder %v329, %v331
    %v333 = vsel %vm332, %v328, inf
    %334 = vmin.xlane.f32.xlu0 %v333
    %v335 = vpop.xlane.xlu0 %334
    %v336 = vcvt.f32.s32 %v335
    %v337 = vcvt.f32.s32 %v331
    %v338 = vshll.u32 %v337, 16
    %v339 = vadd.s32 %v338, %v336
    %vm340 = vcmp.eq.s32.totalorder %v243, %v324
    %vm341 = vcmp.eq.s32.totalorder %v243, %v339
    %v342 = vsel %vm340, -inf, %v293
    %v343 = vsel %vm341, -inf, %v294
    %vm344 = vcmp.eq.s32.totalorder %v243, 1
    %v345 = vsel %vm344, %v302, %v296
    %v346 = vsel %vm344, %v305, %v297
    %v347 = vsel %vm344, %v324, %v298
    %v348 = vsel %vm344, %v339, %v299
    %v349 = vsel %vm250, %v342, -inf
    %350 = vmax.xlane.f32.xlu0 %v349
    %v351 = vpop.xlane.xlu0 %350
    %v352 = vsel %vm250, %v343, -inf
    %353 = vmax.xlane.f32.xlu0 %v352
    %v354 = vpop.xlane.xlu0 %353
    %vm355 = vcmp.eq.f32.partialorder %v342, %v351
    %vm356 = vcmp.eq.f32.partialorder %v343, %v354
    %v357 = vsel %vm355, %v243, 16
    %v358 = vsel %vm356, %v243, 16
    %v359 = vsel %vm250, %v357, 2147483647
    %v360 = vand.u32 %v359, 65535
    %v361 = vshra.s32 %v359, 16
    %v362 = vcvt.s32.f32 %v360
    %v363 = vcvt.s32.f32 %v361
    %364 = vmin.xlane.f32.xlu0 %v363
    %v365 = vpop.xlane.xlu0 %364
    %vm366 = vcmp.eq.f32.partialorder %v363, %v365
    %v367 = vsel %vm366, %v362, inf
    %368 = vmin.xlane.f32.xlu0 %v367
    %v369 = vpop.xlane.xlu0 %368
    %v370 = vcvt.f32.s32 %v369
    %v371 = vcvt.f32.s32 %v365
    %v372 = vshll.u32 %v371, 16
    %v373 = vadd.s32 %v372, %v370
    %v374 = vsel %vm250, %v358, 2147483647
    %v375 = vand.u32 %v374, 65535
    %v376 = vshra.s32 %v374, 16
    %v377 = vcvt.s32.f32 %v375
    %v378 = vcvt.s32.f32 %v376
    %379 = vmin.xlane.f32.xlu0 %v378
    %v380 = vpop.xlane.xlu0 %379
    %vm381 = vcmp.eq.f32.partialorder %v378, %v380
    %v382 = vsel %vm381, %v377, inf
    %383 = vmin.xlane.f32.xlu0 %v382
    %v384 = vpop.xlane.xlu0 %383
    %v385 = vcvt.f32.s32 %v384
    %v386 = vcvt.f32.s32 %v380
    %v387 = vshll.u32 %v386, 16
    %v388 = vadd.s32 %v387, %v385
    %vm389 = vcmp.eq.s32.totalorder %v243, %v373
    %vm390 = vcmp.eq.s32.totalorder %v243, %v388
    %v391 = vsel %vm389, -inf, %v342
    %v392 = vsel %vm390, -inf, %v343
    %vm393 = vcmp.eq.s32.totalorder %v243, 2
    %v394 = vsel %vm393, %v351, %v345
    %v395 = vsel %vm393, %v354, %v346
    %v396 = vsel %vm393, %v373, %v347
    %v397 = vsel %vm393, %v388, %v348
    %v398 = vsel %vm250, %v391, -inf
    %399 = vmax.xlane.f32.xlu0 %v398
    %v400 = vpop.xlane.xlu0 %399
    %v401 = vsel %vm250, %v392, -inf
    %402 = vmax.xlane.f32.xlu0 %v401
    %v403 = vpop.xlane.xlu0 %402
    %vm404 = vcmp.eq.f32.partialorder %v391, %v400
    %vm405 = vcmp.eq.f32.partialorder %v392, %v403
    %v406 = vsel %vm404, %v243, 16
    %v407 = vsel %vm405, %v243, 16
    %v408 = vsel %vm250, %v406, 2147483647
    %v409 = vand.u32 %v408, 65535
    %v410 = vshra.s32 %v408, 16
    %v411 = vcvt.s32.f32 %v409
    %v412 = vcvt.s32.f32 %v410
    %413 = vmin.xlane.f32.xlu0 %v412
    %v414 = vpop.xlane.xlu0 %413
    %vm415 = vcmp.eq.f32.partialorder %v412, %v414
    %v416 = vsel %vm415, %v411, inf
    %417 = vmin.xlane.f32.xlu0 %v416
    %v418 = vpop.xlane.xlu0 %417
    %v419 = vcvt.f32.s32 %v418
    %v420 = vcvt.f32.s32 %v414
    %v421 = vshll.u32 %v420, 16
    %v422 = vadd.s32 %v421, %v419
    %v423 = vsel %vm250, %v407, 2147483647
    %v424 = vand.u32 %v423, 65535
    %v425 = vshra.s32 %v423, 16
    %v426 = vcvt.s32.f32 %v424
    %v427 = vcvt.s32.f32 %v425
    %428 = vmin.xlane.f32.xlu0 %v427
    %v429 = vpop.xlane.xlu0 %428
    %vm430 = vcmp.eq.f32.partialorder %v427, %v429
    %v431 = vsel %vm430, %v426, inf
    %432 = vmin.xlane.f32.xlu0 %v431
    %v433 = vpop.xlane.xlu0 %432
    %v434 = vcvt.f32.s32 %v433
    %v435 = vcvt.f32.s32 %v429
    %v436 = vshll.u32 %v435, 16
    %v437 = vadd.s32 %v436, %v434
    %vm438 = vcmp.eq.s32.totalorder %v243, 3
    %v439 = vsel %vm438, %v400, %v394
    %v440 = vsel %vm438, %v403, %v395
    %v441 = vsel %vm438, %v422, %v396
    %v442 = vsel %vm438, %v437, %v397
    %vm443 = vcmp.le.f32.partialorder %v439, -1e+38
    %vm444 = vcmp.le.f32.partialorder %v440, -1e+38
    %v445 = vsel %vm443, -inf, %v439
    %v446 = vsel %vm444, -inf, %v440
    %447 = vst [vmem:[%s4] sm:$0xff] %v445
    %448 = vst [vmem:[%s4 + $0x8] sm:$0xff] %v446
    %449 = vst [vmem:[%s5] sm:$0xff] %v441
    %450 = vst [vmem:[%s5 + $0x8] sm:$0xff] %v442
    %451 = vst [vmem:[#allocation8] sm:$0xff] %v179
    %452 = vst [vmem:[#allocation8 + $0x8] sm:$0xff] %v182
    %453 = vst.msk [vmem:[#allocation9] sm:$0xff] %vm250, %v229
    %454 = vst.msk [vmem:[#allocation9 + $0x8] sm:$0xff] %vm250, %v232
    // Predicated region
    $region30: #{_first_call.1} parent=1 // pred_check
      _
    $region31: #{_first_call.1} parent=1 // pred_check_branch
      %456 = sbr.rel (0) target = $region33
    $region32: #{_first_call.1} parent=1 // pred_region
      _
    $region33: #{_first_call.1} parent=1 // pred_fallthru
      _
    // Predicated region
    $region34: #{_first_call.1} parent=1 // pred_check
      _
    $region35: #{_first_call.1} parent=1 // pred_check_branch
      %458 = sbr.rel (0) target = $region37
    $region36: #{_first_call.1} parent=1 // pred_region
      _
    $region37: #{_first_call.1} parent=1 // pred_fallthru
      _
    // Predicated region
    $region38: #{_first_call.1} parent=1 // pred_check
      _
    $region39: #{_first_call.1} parent=1 // pred_check_branch
      %460 = sbr.rel (0) target = $region41
    $region40: #{_first_call.1} parent=1 // pred_region
      %s462 = ssub.s32 256, 256
      %463 = vsyncadd [#allocation4], %s462
      %s464 = sshll.u32 [#allocation8], 4
      %s465 = int_to_ptr.vmem [resolvable:$true] %s464
      %470 = dma.vmem_to_hbm [thread:$0]  %s465, 256, %s6, [#allocation4], 128, 128, 8
    $region41: #{_first_call.1} parent=1 // pred_fallthru
      _
    // Predicated region
    $region42: #{_first_call.1} parent=1 // pred_check
      _
    $region43: #{_first_call.1} parent=1 // pred_check_branch
      %472 = sbr.rel (0) target = $region45
    $region44: #{_first_call.1} parent=1 // pred_region
      %s474 = ssub.s32 256, 256
      %475 = vsyncadd [#allocation10], %s474
      %s476 = sshll.u32 [#allocation9], 4
      %s477 = int_to_ptr.vmem [resolvable:$true] %s476
      %482 = dma.vmem_to_hbm [thread:$0]  %s477, 256, %s7, [#allocation10], 128, 128, 8
    $region45: #{_first_call.1} parent=1 // pred_fallthru
      _
    // Predicated region
    $region46: #{_first_call.1} parent=1 // pred_check
      _
    $region47: #{_first_call.1} parent=1 // pred_check_branch
      %484 = sbr.rel (0) target = $region49
    $region48: #{_first_call.1} parent=1 // pred_region
      _
    $region49: #{_first_call.1} parent=1 // pred_fallthru
      _
    // Predicated region
    $region50: #{_first_call.1} parent=1 // pred_check
      _
    $region51: #{_first_call.1} parent=1 // pred_check_branch
      %486 = sbr.rel (0) target = $region53
    $region52: #{_first_call.1} parent=1 // pred_region
      _
    $region53: #{_first_call.1} parent=1 // pred_fallthru
      _
    // Predicated region
    $region54: #{_first_call.1} parent=1 // pred_check
      _
    $region55: #{_first_call.1} parent=1 // pred_check_branch
      %488 = sbr.rel (0) target = $region57
    $region56: #{_first_call.1} parent=1 // pred_region
      %489 = dma.done [#allocation4], 256
    $region57: #{_first_call.1} parent=1 // pred_fallthru
      _
    // Predicated region
    $region58: #{_first_call.1} parent=1 // pred_check
      _
    $region59: #{_first_call.1} parent=1 // pred_check_branch
      %491 = sbr.rel (0) target = $region61
    $region60: #{_first_call.1} parent=1 // pred_region
      %492 = dma.done [#allocation10], 256
    $region61: #{_first_call.1} parent=1 // pred_fallthru
      _
    %493 = vsyncpa [#allocation3], 1
    %494 = vsyncpa [#allocation6], 1
    %495 = vsyncpa [#allocation4], 1
    %496 = vsyncpa [#allocation10], 1

</llo_original>
